<compile_context>
chip_gen: v6e
topology: v6e:2x2x1
jax: 0.10.0
libtpu: 0.0.40
codegen_flags: <defaults>
</compile_context>

<pallas_src>
import functools
import math

import jax
import jax.numpy as jnp
from jax import lax
from jax.experimental import pallas as pl
from jax.experimental.pallas import tpu as pltpu


def _wrap_i32(v):
    """Python int -> int32-representable int with uint32 wrap semantics."""
    v &= 0xFFFFFFFF
    return v - (1 << 32) if v >= (1 << 31) else v


_HASH_A = _wrap_i32(0x7FEB352D)
_HASH_B = _wrap_i32(0x846CA68B)
_GOLDEN = _wrap_i32(0x9E3779B9)


def _lrs(x, k):
    """Logical right shift on int32 bit patterns (arithmetic shift + mask)."""
    return (x >> k) & ((1 << (32 - k)) - 1)


def _hash32(x):
    """lowbias32 integer hash: good avalanche on counter-style inputs."""
    x = x ^ _lrs(x, 16)
    x = x * _HASH_A
    x = x ^ _lrs(x, 15)
    x = x * _HASH_B
    x = x ^ _lrs(x, 16)
    return x


def _gaussian_noise_kernel(seed_ref, x_ref, o_ref, *, mean, sigma):
    rows, cols = x_ref.shape
    half = cols // 2

    seed = seed_ref[0]
    blk = pl.program_id(0)

    # Global pair index: (blk*rows + r) * half + c, folded so the block/seed
    # part is a scalar add and only (rows,1) / (1,half) iotas are materialized.
    row_ids = lax.broadcasted_iota(jnp.int32, (rows, 1), 0)
    col_ids = lax.broadcasted_iota(jnp.int32, (1, half), 1)
    base = (blk * rows) * half + seed * _GOLDEN
    bits = _hash32(base + row_ids * half + col_ids)

    # One hash per Box-Muller pair -> two 16-bit uniforms.
    inv16 = jnp.float32(1.0 / 65536.0)
    u1 = (_lrs(bits, 16).astype(jnp.float32) + 1.0) * inv16   # (0, 1]: log finite
    u2 = (bits & 0xFFFF).astype(jnp.float32) * inv16           # [0, 1)

    # Box-Muller pair: one log/sqrt yields two normals; sigma folded into sqrt.
    r = jnp.sqrt(jnp.float32(-2.0 * sigma * sigma) * jnp.log(u1))
    theta = jnp.float32(2.0 * math.pi) * u2

    n_cos = r * jnp.cos(theta)
    n_sin = r * jnp.sin(theta)
    if mean != 0.0:  # skip the add entirely at trace time when mean == 0
        n_cos = n_cos + jnp.float32(mean)
        n_sin = n_sin + jnp.float32(mean)

    # Two half-width stores (half is a multiple of 128 on the main path), so no
    # full-width noise temporary is assembled in VMEM.
    o_ref[:, :half] = (x_ref[:, :half].astype(jnp.float32) + n_cos).astype(o_ref.dtype)
    o_ref[:, half:] = (x_ref[:, half:].astype(jnp.float32) + n_sin).astype(o_ref.dtype)


def _choose_cols(total):
    """Pick a lane-dense column count C. Returns (C, needs_pad)."""
    # Prefer C whose Box-Muller halves are >=128 lanes (unmasked stores) AND
    # whose row count M = total/C is a multiple of 8 with >=16 rows, so the
    # parallel grid has >=2 steps (lets v7x's two TensorCores split the work).
    for c in (1024, 512, 256):
        m = total // c
        if total % c == 0 and m >= 16 and m % 8 == 0:
            return c, False
    for c in (1024, 512, 256, 128):
        if total % c == 0:
            return c, False
    return 128, True  # truly ragged element count: pad (rare fallback)


def _choose_rows_per_block(m):
    """Row tile: exact multiple-of-8 divisor of m, <=512 rows, >=~2 grid steps."""
    if m <= 8 or m % 8 != 0:
        return m                               # full-dim block, single grid step
    target = -(-m // 8)                        # ceil(m/8): aim for ~8 grid steps
    tm = min(512, ((target + 7) // 8) * 8)
    while m % tm:                              # shrink to an exact divisor
        tm -= 8
    return tm


@functools.partial(jax.jit, static_argnames=("mean", "sigma", "training"))
def gaussian_noise(x, seed, *, mean=0.0, sigma=0.05, training=True):
    """Pallas implementation of GaussianNoise.forward."""
    if not training:
        return x  # eval mode: identity

    orig_shape = x.shape
    orig_dtype = x.dtype
    total = x.size

    C, needs_pad = _choose_cols(total)
    flat = x.reshape(-1)
    padded_total = total
    if needs_pad:
        # Rare ragged fallback (element count not a multiple of 128).
        padded_total = ((total + C - 1) // C) * C
        flat = jnp.pad(flat, (0, padded_total - total))
    M = padded_total // C
    x2d = flat.reshape(M, C)

    TM = _choose_rows_per_block(M)
    grid = (M // TM,)

    seed_arr = jnp.asarray(seed, dtype=jnp.int32).reshape((1,))

    out2d = pl.pallas_call(
        functools.partial(_gaussian_noise_kernel, mean=float(mean), sigma=float(sigma)),
        out_shape=jax.ShapeDtypeStruct((M, C), orig_dtype),
        grid_spec=pltpu.PrefetchScalarGridSpec(
            num_scalar_prefetch=1,
            grid=grid,
            # index_maps receive the scalar-prefetch ref as a trailing arg
            in_specs=[pl.BlockSpec((TM, C), lambda i, seed_ref: (i, 0))],
            out_specs=pl.BlockSpec((TM, C), lambda i, seed_ref: (i, 0)),
        ),
        compiler_params=pltpu.CompilerParams(
            dimension_semantics=("parallel",),
        ),
    )(seed_arr, x2d)

    out_flat = out2d.reshape(-1)
    if needs_pad:
        out_flat = out_flat[:total]
    return out_flat.reshape(orig_shape)


if __name__ == "__main__":
    key = jax.random.PRNGKey(0)
    # NCHW, matching PyTorch convention: batch=2, channels=4, spatial=16x16
    x = jax.random.normal(key, (2, 4, 16, 16), dtype=jnp.float32)

    mean, sigma = 0.0, 0.05

    # training mode: x + N(mean, sigma)
    y = gaussian_noise(x, 1234, mean=mean, sigma=sigma, training=True)
    y = jax.block_until_ready(y)

    # eval mode: identity
    y_eval = gaussian_noise(x, 1234, mean=mean, sigma=sigma, training=False)
    y_eval = jax.block_until_ready(y_eval)

    assert y.shape == x.shape and y.dtype == x.dtype
    assert bool(jnp.all(jnp.isfinite(y)))
    assert bool(jnp.array_equal(y_eval, x))

    # sanity: added noise should have roughly the requested statistics
    noise = y - x
    assert abs(float(jnp.mean(noise)) - mean) < 0.02
    assert abs(float(jnp.std(noise)) - sigma) < 0.02

    print("KERNEL_OK")
</pallas_src>

<mosaic_0001>
module attributes {stable_mosaic.version = 11 : i64} {
  func.func @_gaussian_noise_kernel(%arg0: i32, %arg1: memref<1xi32, #tpu.memory_space<smem>>, %arg2: memref<2x1024xf32, #tpu.memory_space<vmem>>, %arg3: memref<2x1024xf32, #tpu.memory_space<vmem>>) attributes {dimension_semantics = [#tpu.dimension_semantics<parallel>], iteration_bounds = array<i64: 1>, scalar_prefetch = 1 : i64, scratch_operands = 0 : i64, tpu.core_type = #tpu.core_type<tc>, window_params = [{transform_indices = @transform_0, window_bounds = array<i64: 2, 1024>}, {transform_indices = @transform_1, window_bounds = array<i64: 2, 1024>}]} {
    %c0 = arith.constant 0 : index
    %0 = memref.load %arg1[%c0] : memref<1xi32, #tpu.memory_space<smem>>
    %1 = tpu.iota {dimensions = array<i32: 0>} : vector<2x1xi32>
    %2 = tpu.iota {dimensions = array<i32: 1>} : vector<1x512xi32>
    %c2_i32 = arith.constant 2 : i32
    %3 = arith.muli %arg0, %c2_i32 : i32
    %c512_i32 = arith.constant 512 : i32
    %4 = arith.muli %3, %c512_i32 : i32
    %c-1640531527_i32 = arith.constant -1640531527 : i32
    %5 = arith.muli %0, %c-1640531527_i32 : i32
    %6 = arith.addi %4, %5 : i32
    %c512_i32_0 = arith.constant 512 : i32
    %7 = vector.broadcast %c512_i32_0 : i32 to vector<2x1xi32>
    %8 = arith.muli %1, %7 : vector<2x1xi32>
    %9 = vector.broadcast %6 : i32 to vector<2x1xi32>
    %10 = arith.addi %9, %8 : vector<2x1xi32>
    %11 = vector.broadcast %10 : vector<2x1xi32> to vector<2x512xi32>
    %12 = vector.broadcast %2 : vector<1x512xi32> to vector<2x512xi32>
    %13 = arith.addi %11, %12 : vector<2x512xi32>
    %c16_i32 = arith.constant 16 : i32
    %14 = vector.broadcast %c16_i32 : i32 to vector<2x512xi32>
    %15 = arith.shrsi %13, %14 : vector<2x512xi32>
    %c65535_i32 = arith.constant 65535 : i32
    %16 = vector.broadcast %c65535_i32 : i32 to vector<2x512xi32>
    %17 = arith.andi %15, %16 : vector<2x512xi32>
    %18 = arith.xori %13, %17 : vector<2x512xi32>
    %c2146121005_i32 = arith.constant 2146121005 : i32
    %19 = vector.broadcast %c2146121005_i32 : i32 to vector<2x512xi32>
    %20 = arith.muli %18, %19 : vector<2x512xi32>
    %c15_i32 = arith.constant 15 : i32
    %21 = vector.broadcast %c15_i32 : i32 to vector<2x512xi32>
    %22 = arith.shrsi %20, %21 : vector<2x512xi32>
    %c131071_i32 = arith.constant 131071 : i32
    %23 = vector.broadcast %c131071_i32 : i32 to vector<2x512xi32>
    %24 = arith.andi %22, %23 : vector<2x512xi32>
    %25 = arith.xori %20, %24 : vector<2x512xi32>
    %c-2073254261_i32 = arith.constant -2073254261 : i32
    %26 = vector.broadcast %c-2073254261_i32 : i32 to vector<2x512xi32>
    %27 = arith.muli %25, %26 : vector<2x512xi32>
    %c16_i32_1 = arith.constant 16 : i32
    %28 = vector.broadcast %c16_i32_1 : i32 to vector<2x512xi32>
    %29 = arith.shrsi %27, %28 : vector<2x512xi32>
    %c65535_i32_2 = arith.constant 65535 : i32
    %30 = vector.broadcast %c65535_i32_2 : i32 to vector<2x512xi32>
    %31 = arith.andi %29, %30 : vector<2x512xi32>
    %32 = arith.xori %27, %31 : vector<2x512xi32>
    %c16_i32_3 = arith.constant 16 : i32
    %33 = vector.broadcast %c16_i32_3 : i32 to vector<2x512xi32>
    %34 = arith.shrsi %32, %33 : vector<2x512xi32>
    %c65535_i32_4 = arith.constant 65535 : i32
    %35 = vector.broadcast %c65535_i32_4 : i32 to vector<2x512xi32>
    %36 = arith.andi %34, %35 : vector<2x512xi32>
    %37 = arith.sitofp %36 : vector<2x512xi32> to vector<2x512xf32>
    %cst = arith.constant 1.000000e+00 : f32
    %38 = vector.broadcast %cst : f32 to vector<2x512xf32>
    %39 = arith.addf %37, %38 : vector<2x512xf32>
    %cst_5 = arith.constant 1.52587891E-5 : f32
    %40 = vector.broadcast %cst_5 : f32 to vector<2x512xf32>
    %41 = arith.mulf %39, %40 : vector<2x512xf32>
    %c65535_i32_6 = arith.constant 65535 : i32
    %42 = vector.broadcast %c65535_i32_6 : i32 to vector<2x512xi32>
    %43 = arith.andi %32, %42 : vector<2x512xi32>
    %44 = arith.sitofp %43 : vector<2x512xi32> to vector<2x512xf32>
    %cst_7 = arith.constant 1.52587891E-5 : f32
    %45 = vector.broadcast %cst_7 : f32 to vector<2x512xf32>
    %46 = arith.mulf %44, %45 : vector<2x512xf32>
    %47 = math.log %41 : vector<2x512xf32>
    %cst_8 = arith.constant -5.000000e-03 : f32
    %48 = vector.broadcast %cst_8 : f32 to vector<2x512xf32>
    %49 = arith.mulf %48, %47 : vector<2x512xf32>
    %50 = math.sqrt %49 : vector<2x512xf32>
    %cst_9 = arith.constant 6.28318548 : f32
    %51 = vector.broadcast %cst_9 : f32 to vector<2x512xf32>
    %52 = arith.mulf %51, %46 : vector<2x512xf32>
    %53 = math.cos %52 : vector<2x512xf32>
    %54 = arith.mulf %50, %53 : vector<2x512xf32>
    %55 = math.sin %52 : vector<2x512xf32>
    %56 = arith.mulf %50, %55 : vector<2x512xf32>
    %c0_10 = arith.constant 0 : index
    %c0_11 = arith.constant 0 : index
    %57 = vector.load %arg2[%c0_10, %c0_11] : memref<2x1024xf32, #tpu.memory_space<vmem>>, vector<2x512xf32>
    %58 = arith.addf %57, %54 : vector<2x512xf32>
    %c0_12 = arith.constant 0 : index
    %c0_13 = arith.constant 0 : index
    %59 = vector.load %arg3[%c0_12, %c0_13] : memref<2x1024xf32, #tpu.memory_space<vmem>>, vector<2x512xf32>
    tpu.vector_store %arg3[%c0_12, %c0_13], %58 {strides = array<i32>} : memref<2x1024xf32, #tpu.memory_space<vmem>>, vector<2x512xf32>,
    %c0_14 = arith.constant 0 : index
    %c512 = arith.constant 512 : index
    %60 = vector.load %arg2[%c0_14, %c512] : memref<2x1024xf32, #tpu.memory_space<vmem>>, vector<2x512xf32>
    %61 = arith.addf %60, %56 : vector<2x512xf32>
    %c0_15 = arith.constant 0 : index
    %c512_16 = arith.constant 512 : index
    %62 = vector.load %arg3[%c0_15, %c512_16] : memref<2x1024xf32, #tpu.memory_space<vmem>>, vector<2x512xf32>
    tpu.vector_store %arg3[%c0_15, %c512_16], %61 {strides = array<i32>} : memref<2x1024xf32, #tpu.memory_space<vmem>>, vector<2x512xf32>,
    return
  }
  func.func @transform_0(%arg0: i32, %arg1: memref<1xi32, #tpu.memory_space<smem>>) -> (i32, i32) {
    %c0_i32 = arith.constant 0 : i32
    %c0_i32_0 = arith.constant 0 : i32
    return %arg0, %c0_i32 : i32, i32
  }
  func.func @transform_1(%arg0: i32, %arg1: memref<1xi32, #tpu.memory_space<smem>>) -> (i32, i32) {
    %c0_i32 = arith.constant 0 : i32
    %c0_i32_0 = arith.constant 0 : i32
    return %arg0, %c0_i32 : i32, i32
  }
}

</mosaic_0001>

<llo_original>
// kernel: gaussian_noise.1
$region0: #{gaussian_noise.1}
  #allocation0 [shape = 'u32[]', space=smem, size = 0x4, offset = 0x4, fixed_abs, tag = 'smem constant byte address 0x4 - core index']
  #allocation1 [shape = 'u32[144,128]{1,0:T(1,128)}', space=vmem, size = 0x12000, scoped, tag = 'internal scratch']
  #allocation2 [shape = 's32[1]{0}', space=sflag, size = 0x4, scoped, tag = 'scoped memory for gaussian_noise.1']
  #allocation3 [shape = 's32[1]{0:T(128)S(6)}', space=smem, size = 0x200, scoped, tag = 'prefetched SMEM operand 0']
  %s0 = inlined_call_operand.<no memory space> [shape: s32[1], index: 0, kind: input, shape index: {}]
  %s1 = inlined_call_operand.vmem [shape: f32[2,1024], index: 1, kind: input, shape index: {}]
  %s2 = inlined_call_operand.vmem [shape: f32[2,1024], index: 2, kind: output, shape index: {}]
  %s3 = sld [smem:[#allocation0]]
  $region14: #{gaussian_noise.1} parent=0
    _
  %s5 = ssub.s32 1, %s3
  %s6 = scalar_select 0, %s5, %s3
  %7 = sst [smem:[#allocation3]] %s0
  // Predicated region
  $region2: #{gaussian_noise.1} parent=0 // pred_check
    _
  $region3: #{gaussian_noise.1} parent=0 // pred_check_branch
    %9 = sbr.rel (0) target = $region5
  $region4: #{gaussian_noise.1} parent=0 // pred_region
    _
  $region5: #{gaussian_noise.1} parent=0 // pred_fallthru
    _
  %s10 = sld [smem:[#allocation3]]
  %v11 = vlaneseq
  %v12 = vshrl.u32 %v11, 7
  %v13 = vlaneseq
  %v14 = vand.u32 %v13, 127
  %v15 = vadd.s32 %v14, 128
  %v16 = vadd.s32 %v14, 256
  %v17 = vadd.s32 %v14, 384
  %s18 = smul.u32 0, 1024
  %s19 = smul.u32 %s10, 2654435769
  %s20 = sadd.s32 %s18, %s19
  %v21 = vmul.u32 %v12, 512
  %v22 = vstv %s20
  %v23 = vadd.s32 %v22, %v21
  %v24 = vadd.s32 %v23, %v14
  %v25 = vadd.s32 %v23, %v15
  %v26 = vadd.s32 %v23, %v16
  %v27 = vadd.s32 %v23, %v17
  %v28 = vshra.s32 %v24, 16
  %v29 = vshra.s32 %v25, 16
  %v30 = vshra.s32 %v26, 16
  %v31 = vshra.s32 %v27, 16
  %v32 = vand.u32 %v28, 65535
  %v33 = vand.u32 %v29, 65535
  %v34 = vand.u32 %v30, 65535
  %v35 = vand.u32 %v31, 65535
  %v36 = vxor.u32 %v24, %v32
  %v37 = vxor.u32 %v25, %v33
  %v38 = vxor.u32 %v26, %v34
  %v39 = vxor.u32 %v27, %v35
  %v40 = vmul.u32 %v36, 2146121005
  %v41 = vmul.u32 %v37, 2146121005
  %v42 = vmul.u32 %v38, 2146121005
  %v43 = vmul.u32 %v39, 2146121005
  %v44 = vshra.s32 %v40, 15
  %v45 = vshra.s32 %v41, 15
  %v46 = vshra.s32 %v42, 15
  %v47 = vshra.s32 %v43, 15
  %v48 = vand.u32 %v44, 131071
  %v49 = vand.u32 %v45, 131071
  %v50 = vand.u32 %v46, 131071
  %v51 = vand.u32 %v47, 131071
  %v52 = vxor.u32 %v40, %v48
  %v53 = vxor.u32 %v41, %v49
  %v54 = vxor.u32 %v42, %v50
  %v55 = vxor.u32 %v43, %v51
  %v56 = vmul.u32 %v52, 2221713035
  %v57 = vmul.u32 %v53, 2221713035
  %v58 = vmul.u32 %v54, 2221713035
  %v59 = vmul.u32 %v55, 2221713035
  %v60 = vshra.s32 %v56, 16
  %v61 = vshra.s32 %v57, 16
  %v62 = vshra.s32 %v58, 16
  %v63 = vshra.s32 %v59, 16
  %v64 = vand.u32 %v60, 65535
  %v65 = vand.u32 %v61, 65535
  %v66 = vand.u32 %v62, 65535
  %v67 = vand.u32 %v63, 65535
  %v68 = vxor.u32 %v56, %v64
  %v69 = vxor.u32 %v57, %v65
  %v70 = vxor.u32 %v58, %v66
  %v71 = vxor.u32 %v59, %v67
  %v72 = vshra.s32 %v68, 16
  %v73 = vshra.s32 %v69, 16
  %v74 = vshra.s32 %v70, 16
  %v75 = vshra.s32 %v71, 16
  %v76 = vand.u32 %v72, 65535
  %v77 = vand.u32 %v73, 65535
  %v78 = vand.u32 %v74, 65535
  %v79 = vand.u32 %v75, 65535
  %v80 = vcvt.s32.f32 %v76
  %v81 = vcvt.s32.f32 %v77
  %v82 = vcvt.s32.f32 %v78
  %v83 = vcvt.s32.f32 %v79
  %v84 = vadd.f32 %v80, 1.0
  %v85 = vadd.f32 %v81, 1.0
  %v86 = vadd.f32 %v82, 1.0
  %v87 = vadd.f32 %v83, 1.0
  %v88 = vmul.f32 %v84, 1.5258789e-05
  %v89 = vmul.f32 %v85, 1.5258789e-05
  %v90 = vmul.f32 %v86, 1.5258789e-05
  %v91 = vmul.f32 %v87, 1.5258789e-05
  %v92 = vand.u32 %v68, 65535
  %v93 = vand.u32 %v69, 65535
  %v94 = vand.u32 %v70, 65535
  %v95 = vand.u32 %v71, 65535
  %v96 = vcvt.s32.f32 %v92
  %v97 = vcvt.s32.f32 %v93
  %v98 = vcvt.s32.f32 %v94
  %v99 = vcvt.s32.f32 %v95
  %v100 = vmul.f32 %v96, 1.5258789e-05
  %v101 = vmul.f32 %v97, 1.5258789e-05
  %v102 = vmul.f32 %v98, 1.5258789e-05
  %v103 = vmul.f32 %v99, 1.5258789e-05
  %v104 = vlog2.pop %v88
  %v105 = vmul.f32 %v104, 0.6931472
  %v106 = vlog2.pop %v89
  %v107 = vmul.f32 %v106, 0.6931472
  %v108 = vlog2.pop %v90
  %v109 = vmul.f32 %v108, 0.6931472
  %v110 = vlog2.pop %v91
  %v111 = vmul.f32 %v110, 0.6931472
  %v112 = vmul.f32 %v105, -0.005
  %v113 = vmul.f32 %v107, -0.005
  %v114 = vmul.f32 %v109, -0.005
  %v115 = vmul.f32 %v111, -0.005
  %v116 = vrsqrt.pop %v112
  %v117 = vmul.f32 %v112, %v116
  %vm118 = vcmp.eq.f32.partialorder %v112, inf
  %v119 = vsel %vm118, %v112, %v117
  %vm120 = vcmp.eq.f32.partialorder %v112, 0.0
  %v121 = vand.u32 %v112, 2147483648
  %v122 = vsel %vm120, %v121, %v119
  %v123 = vrsqrt.pop %v113
  %v124 = vmul.f32 %v113, %v123
  %vm125 = vcmp.eq.f32.partialorder %v113, inf
  %v126 = vsel %vm125, %v113, %v124
  %vm127 = vcmp.eq.f32.partialorder %v113, 0.0
  %v128 = vand.u32 %v113, 2147483648
  %v129 = vsel %vm127, %v128, %v126
  %v130 = vrsqrt.pop %v114
  %v131 = vmul.f32 %v114, %v130
  %vm132 = vcmp.eq.f32.partialorder %v114, inf
  %v133 = vsel %vm132, %v114, %v131
  %vm134 = vcmp.eq.f32.partialorder %v114, 0.0
  %v135 = vand.u32 %v114, 2147483648
  %v136 = vsel %vm134, %v135, %v133
  %v137 = vrsqrt.pop %v115
  %v138 = vmul.f32 %v115, %v137
  %vm139 = vcmp.eq.f32.partialorder %v115, inf
  %v140 = vsel %vm139, %v115, %v138
  %vm141 = vcmp.eq.f32.partialorder %v115, 0.0
  %v142 = vand.u32 %v115, 2147483648
  %v143 = vsel %vm141, %v142, %v140
  %v144 = vmul.f32 %v100, 6.2831855
  %v145 = vmul.f32 %v101, 6.2831855
  %v146 = vmul.f32 %v102, 6.2831855
  %v147 = vmul.f32 %v103, 6.2831855
  %v148 = vand.u32 2147483647, %v144
  %vm149 = vcmp.le.f32.partialorder %v148, 0.7853982
  %vm150 = vcmp.lt.s32.totalorder %v144, 0
  %v151 = vand.u32 %v144, 2139095040
  %v152 = vshrl.u32 %v151, 23
  %v153 = vsub.s32 %v152, 127
  %v154 = vand.u32 2147483647, %v144
  %v155 = vand.u32 %v154, 8388607
  %v156 = vor.u32 %v155, 8388608
  %v157 = vsub.s32 0, %v156
  %v158 = vadd.s32 %v153, 1
  %vm159 = vcmp.gt.s32.totalorder %v158, 0
  %v160 = vsel %vm159, %v158, 0
  %v161 = vshrl.u32 %v160, 5
  %v162 = vand.u32 %v160, 31
  %v163 = vsub.s32 32, %v162
  %v164 = vshrl.u32 683565275, %v163
  %v165 = vshll.u32 683565275, %v162
  %v166 = vshrl.u32 2475754826, %v163
  %v167 = vor.u32 %v165, %v166
  %v168 = vshll.u32 2475754826, %v162
  %v169 = vshrl.u32 2131351028, %v163
  %v170 = vor.u32 %v168, %v169
  %v171 = vshll.u32 2131351028, %v162
  %v172 = vshrl.u32 2102212464, %v163
  %v173 = vor.u32 %v171, %v172
  %v174 = vshll.u32 2102212464, %v162
  %v175 = vshrl.u32 920167782, %v163
  %v176 = vor.u32 %v174, %v175
  %v177 = vshll.u32 920167782, %v162
  %v178 = vshrl.u32 1326507024, %v163
  %v179 = vor.u32 %v177, %v178
  %vm180 = vcmp.lt.s32.totalorder %v161, 1
  %vm181 = vcmp.lt.s32.totalorder %v161, 2
  %vm182 = vcmp.lt.s32.totalorder %v161, 3
  %vm183 = vcmp.lt.s32.totalorder %v161, 4
  %v184 = vsel %vm180, %v164, %v167
  %v185 = vsel %vm183, %v173, 2102212464
  %v186 = vsel %vm182, %v170, %v185
  %v187 = vsel %vm181, %v184, %v186
  %v188 = vsel %vm180, %v167, %v170
  %v189 = vsel %vm183, %v176, 920167782
  %v190 = vsel %vm182, %v173, %v189
  %v191 = vsel %vm181, %v188, %v190
  %v192 = vsel %vm180, %v170, %v173
  %v193 = vsel %vm183, %v179, 1326507024
  %v194 = vsel %vm182, %v176, %v193
  %v195 = vsel %vm181, %v192, %v194
  %v196 = vshll.u32 %v156, 8
  %v197 = vmul.u32.u64.compose %v196, %v195
  %v198 = vextract.low.u32 %v197
  %v199 = vextract.high.u32 %v197
  %v200 = vmul.u32.u64.compose %v196, %v191
  %v201 = vextract.low.u32 %v200
  %v202 = vextract.high.u32 %v200
  %v203 = vmul.u32 %v196, %v187
  %v204 = vadd.s32 %v199, %v201
  %vm205 = vc.u32 %v199, %v201
  %v206 = vadd.s32 %v202, 1
  %v207 = vsel %vm205, %v206, %v202
  %v208 = vadd.s32 %v203, %v207
  %v209 = vadd.s32 %v208, 536870912
  %v210 = vshrl.u32 %v209, 30
  %v211 = vshll.u32 %v210, 30
  %v212 = vsub.s32 %v208, %v211
  %vm213 = vcmp.lt.s32.totalorder %v212, 0
  %v214 = vsub.s32 0, %v212
  %v215 = vsel %vm213, %v214, %v212
  %v216 = vclz %v215
  %v217 = vsub.s32 %v216, 2
  %vm218 = vcmp.gt.s32.totalorder 0, %v217
  %v219 = vsel %vm218, 0, %v217
  %v220 = vsub.s32 32, %v219
  %v221 = vshll.u32 %v212, %v219
  %v222 = vshrl.u32 %v204, %v220
  %v223 = vor.u32 %v221, %v222
  %v224 = vsub.s32 4294967266, %v219
  %v225 = vadd.s32 %v224, 127
  %v226 = vshll.u32 %v225, 23
  %v227 = vor.u32 4788187, %v226
  %v228 = vand.u32 2147483647, %v227
  %v230 = vcvt.s32.f32 %v223
  %v231 = vmul.f32 %v230, %v228
  %v232 = vxor.u32 %v231, 2147483648
  %v233 = vsel %vm150, %v232, %v231
  %v234 = vsub.s32 4, %v210
  %v235 = vsel %vm150, %v234, %v210
  %v236 = vsel %vm149, %v144, %v233
  %v237 = vsel %vm149, 0, %v235
  %v238 = vcosq.f32.pop %v236
  %v239 = vsinq.f32.pop %v236
  %vm240 = vweird.f32 %v144
  %v241 = vand.u32 %v237, 3
  %vm242 = vcmp.lt.s32.totalorder %v241, 2
  %vm243 = vcmp.eq.s32.totalorder %v241, 0
  %v244 = vxor.u32 %v239, 2147483648
  %v245 = vsel %vm243, %v238, %v244
  %vm246 = vcmp.eq.s32.totalorder %v241, 2
  %v247 = vxor.u32 %v238, 2147483648
  %v248 = vsel %vm246, %v247, %v239
  %v249 = vsel %vm242, %v245, %v248
  %v250 = vsel %vm240, nan, %v249
  %v251 = vand.u32 2147483647, %v145
  %vm252 = vcmp.le.f32.partialorder %v251, 0.7853982
  %vm253 = vcmp.lt.s32.totalorder %v145, 0
  %v254 = vand.u32 %v145, 2139095040
  %v255 = vshrl.u32 %v254, 23
  %v256 = vsub.s32 %v255, 127
  %v257 = vand.u32 2147483647, %v145
  %v258 = vand.u32 %v257, 8388607
  %v259 = vor.u32 %v258, 8388608
  %v260 = vsub.s32 0, %v259
  %v261 = vadd.s32 %v256, 1
  %vm262 = vcmp.gt.s32.totalorder %v261, 0
  %v263 = vsel %vm262, %v261, 0
  %v264 = vshrl.u32 %v263, 5
  %v265 = vand.u32 %v263, 31
  %v266 = vsub.s32 32, %v265
  %v267 = vshrl.u32 683565275, %v266
  %v268 = vshll.u32 683565275, %v265
  %v269 = vshrl.u32 2475754826, %v266
  %v270 = vor.u32 %v268, %v269
  %v271 = vshll.u32 2475754826, %v265
  %v272 = vshrl.u32 2131351028, %v266
  %v273 = vor.u32 %v271, %v272
  %v274 = vshll.u32 2131351028, %v265
  %v275 = vshrl.u32 2102212464, %v266
  %v276 = vor.u32 %v274, %v275
  %v277 = vshll.u32 2102212464, %v265
  %v278 = vshrl.u32 920167782, %v266
  %v279 = vor.u32 %v277, %v278
  %v280 = vshll.u32 920167782, %v265
  %v281 = vshrl.u32 1326507024, %v266
  %v282 = vor.u32 %v280, %v281
  %vm283 = vcmp.lt.s32.totalorder %v264, 1
  %vm284 = vcmp.lt.s32.totalorder %v264, 2
  %vm285 = vcmp.lt.s32.totalorder %v264, 3
  %vm286 = vcmp.lt.s32.totalorder %v264, 4
  %v287 = vsel %vm283, %v267, %v270
  %v288 = vsel %vm286, %v276, 2102212464
  %v289 = vsel %vm285, %v273, %v288
  %v290 = vsel %vm284, %v287, %v289
  %v291 = vsel %vm283, %v270, %v273
  %v292 = vsel %vm286, %v279, 920167782
  %v293 = vsel %vm285, %v276, %v292
  %v294 = vsel %vm284, %v291, %v293
  %v295 = vsel %vm283, %v273, %v276
  %v296 = vsel %vm286, %v282, 1326507024
  %v297 = vsel %vm285, %v279, %v296
  %v298 = vsel %vm284, %v295, %v297
  %v299 = vshll.u32 %v259, 8
  %v300 = vmul.u32.u64.compose %v299, %v298
  %v301 = vextract.low.u32 %v300
  %v302 = vextract.high.u32 %v300
  %v303 = vmul.u32.u64.compose %v299, %v294
  %v304 = vextract.low.u32 %v303
  %v305 = vextract.high.u32 %v303
  %v306 = vmul.u32 %v299, %v290
  %v307 = vadd.s32 %v302, %v304
  %vm308 = vc.u32 %v302, %v304
  %v309 = vadd.s32 %v305, 1
  %v310 = vsel %vm308, %v309, %v305
  %v311 = vadd.s32 %v306, %v310
  %v312 = vadd.s32 %v311, 536870912
  %v313 = vshrl.u32 %v312, 30
  %v314 = vshll.u32 %v313, 30
  %v315 = vsub.s32 %v311, %v314
  %vm316 = vcmp.lt.s32.totalorder %v315, 0
  %v317 = vsub.s32 0, %v315
  %v318 = vsel %vm316, %v317, %v315
  %v319 = vclz %v318
  %v320 = vsub.s32 %v319, 2
  %vm321 = vcmp.gt.s32.totalorder 0, %v320
  %v322 = vsel %vm321, 0, %v320
  %v323 = vsub.s32 32, %v322
  %v324 = vshll.u32 %v315, %v322
  %v325 = vshrl.u32 %v307, %v323
  %v326 = vor.u32 %v324, %v325
  %v327 = vsub.s32 4294967266, %v322
  %v328 = vadd.s32 %v327, 127
  %v329 = vshll.u32 %v328, 23
  %v330 = vor.u32 4788187, %v329
  %v331 = vand.u32 2147483647, %v330
  %v333 = vcvt.s32.f32 %v326
  %v334 = vmul.f32 %v333, %v331
  %v335 = vxor.u32 %v334, 2147483648
  %v336 = vsel %vm253, %v335, %v334
  %v337 = vsub.s32 4, %v313
  %v338 = vsel %vm253, %v337, %v313
  %v339 = vsel %vm252, %v145, %v336
  %v340 = vsel %vm252, 0, %v338
  %v341 = vcosq.f32.pop %v339
  %v342 = vsinq.f32.pop %v339
  %vm343 = vweird.f32 %v145
  %v344 = vand.u32 %v340, 3
  %vm345 = vcmp.lt.s32.totalorder %v344, 2
  %vm346 = vcmp.eq.s32.totalorder %v344, 0
  %v347 = vxor.u32 %v342, 2147483648
  %v348 = vsel %vm346, %v341, %v347
  %vm349 = vcmp.eq.s32.totalorder %v344, 2
  %v350 = vxor.u32 %v341, 2147483648
  %v351 = vsel %vm349, %v350, %v342
  %v352 = vsel %vm345, %v348, %v351
  %v353 = vsel %vm343, nan, %v352
  %v354 = vand.u32 2147483647, %v146
  %vm355 = vcmp.le.f32.partialorder %v354, 0.7853982
  %vm356 = vcmp.lt.s32.totalorder %v146, 0
  %v357 = vand.u32 %v146, 2139095040
  %v358 = vshrl.u32 %v357, 23
  %v359 = vsub.s32 %v358, 127
  %v360 = vand.u32 2147483647, %v146
  %v361 = vand.u32 %v360, 8388607
  %v362 = vor.u32 %v361, 8388608
  %v363 = vsub.s32 0, %v362
  %v364 = vadd.s32 %v359, 1
  %vm365 = vcmp.gt.s32.totalorder %v364, 0
  %v366 = vsel %vm365, %v364, 0
  %v367 = vshrl.u32 %v366, 5
  %v368 = vand.u32 %v366, 31
  %v369 = vsub.s32 32, %v368
  %v370 = vshrl.u32 683565275, %v369
  %v371 = vshll.u32 683565275, %v368
  %v372 = vshrl.u32 2475754826, %v369
  %v373 = vor.u32 %v371, %v372
  %v374 = vshll.u32 2475754826, %v368
  %v375 = vshrl.u32 2131351028, %v369
  %v376 = vor.u32 %v374, %v375
  %v377 = vshll.u32 2131351028, %v368
  %v378 = vshrl.u32 2102212464, %v369
  %v379 = vor.u32 %v377, %v378
  %v380 = vshll.u32 2102212464, %v368
  %v381 = vshrl.u32 920167782, %v369
  %v382 = vor.u32 %v380, %v381
  %v383 = vshll.u32 920167782, %v368
  %v384 = vshrl.u32 1326507024, %v369
  %v385 = vor.u32 %v383, %v384
  %vm386 = vcmp.lt.s32.totalorder %v367, 1
  %vm387 = vcmp.lt.s32.totalorder %v367, 2
  %vm388 = vcmp.lt.s32.totalorder %v367, 3
  %vm389 = vcmp.lt.s32.totalorder %v367, 4
  %v390 = vsel %vm386, %v370, %v373
  %v391 = vsel %vm389, %v379, 2102212464
  %v392 = vsel %vm388, %v376, %v391
  %v393 = vsel %vm387, %v390, %v392
  %v394 = vsel %vm386, %v373, %v376
  %v395 = vsel %vm389, %v382, 920167782
  %v396 = vsel %vm388, %v379, %v395
  %v397 = vsel %vm387, %v394, %v396
  %v398 = vsel %vm386, %v376, %v379
  %v399 = vsel %vm389, %v385, 1326507024
  %v400 = vsel %vm388, %v382, %v399
  %v401 = vsel %vm387, %v398, %v400
  %v402 = vshll.u32 %v362, 8
  %v403 = vmul.u32.u64.compose %v402, %v401
  %v404 = vextract.low.u32 %v403
  %v405 = vextract.high.u32 %v403
  %v406 = vmul.u32.u64.compose %v402, %v397
  %v407 = vextract.low.u32 %v406
  %v408 = vextract.high.u32 %v406
  %v409 = vmul.u32 %v402, %v393
  %v410 = vadd.s32 %v405, %v407
  %vm411 = vc.u32 %v405, %v407
  %v412 = vadd.s32 %v408, 1
  %v413 = vsel %vm411, %v412, %v408
  %v414 = vadd.s32 %v409, %v413
  %v415 = vadd.s32 %v414, 536870912
  %v416 = vshrl.u32 %v415, 30
  %v417 = vshll.u32 %v416, 30
  %v418 = vsub.s32 %v414, %v417
  %vm419 = vcmp.lt.s32.totalorder %v418, 0
  %v420 = vsub.s32 0, %v418
  %v421 = vsel %vm419, %v420, %v418
  %v422 = vclz %v421
  %v423 = vsub.s32 %v422, 2
  %vm424 = vcmp.gt.s32.totalorder 0, %v423
  %v425 = vsel %vm424, 0, %v423
  %v426 = vsub.s32 32, %v425
  %v427 = vshll.u32 %v418, %v425
  %v428 = vshrl.u32 %v410, %v426
  %v429 = vor.u32 %v427, %v428
  %v430 = vsub.s32 4294967266, %v425
  %v431 = vadd.s32 %v430, 127
  %v432 = vshll.u32 %v431, 23
  %v433 = vor.u32 4788187, %v432
  %v434 = vand.u32 2147483647, %v433
  %v436 = vcvt.s32.f32 %v429
  %v437 = vmul.f32 %v436, %v434
  %v438 = vxor.u32 %v437, 2147483648
  %v439 = vsel %vm356, %v438, %v437
  %v440 = vsub.s32 4, %v416
  %v441 = vsel %vm356, %v440, %v416
  %v442 = vsel %vm355, %v146, %v439
  %v443 = vsel %vm355, 0, %v441
  %v444 = vcosq.f32.pop %v442
  %v445 = vsinq.f32.pop %v442
  %vm446 = vweird.f32 %v146
  %v447 = vand.u32 %v443, 3
  %vm448 = vcmp.lt.s32.totalorder %v447, 2
  %vm449 = vcmp.eq.s32.totalorder %v447, 0
  %v450 = vxor.u32 %v445, 2147483648
  %v451 = vsel %vm449, %v444, %v450
  %vm452 = vcmp.eq.s32.totalorder %v447, 2
  %v453 = vxor.u32 %v444, 2147483648
  %v454 = vsel %vm452, %v453, %v445
  %v455 = vsel %vm448, %v451, %v454
  %v456 = vsel %vm446, nan, %v455
  %v457 = vand.u32 2147483647, %v147
  %vm458 = vcmp.le.f32.partialorder %v457, 0.7853982
  %vm459 = vcmp.lt.s32.totalorder %v147, 0
  %v460 = vand.u32 %v147, 2139095040
  %v461 = vshrl.u32 %v460, 23
  %v462 = vsub.s32 %v461, 127
  %v463 = vand.u32 2147483647, %v147
  %v464 = vand.u32 %v463, 8388607
  %v465 = vor.u32 %v464, 8388608
  %v466 = vsub.s32 0, %v465
  %v467 = vadd.s32 %v462, 1
  %vm468 = vcmp.gt.s32.totalorder %v467, 0
  %v469 = vsel %vm468, %v467, 0
  %v470 = vshrl.u32 %v469, 5
  %v471 = vand.u32 %v469, 31
  %v472 = vsub.s32 32, %v471
  %v473 = vshrl.u32 683565275, %v472
  %v474 = vshll.u32 683565275, %v471
  %v475 = vshrl.u32 2475754826, %v472
  %v476 = vor.u32 %v474, %v475
  %v477 = vshll.u32 2475754826, %v471
  %v478 = vshrl.u32 2131351028, %v472
  %v479 = vor.u32 %v477, %v478
  %v480 = vshll.u32 2131351028, %v471
  %v481 = vshrl.u32 2102212464, %v472
  %v482 = vor.u32 %v480, %v481
  %v483 = vshll.u32 2102212464, %v471
  %v484 = vshrl.u32 920167782, %v472
  %v485 = vor.u32 %v483, %v484
  %v486 = vshll.u32 920167782, %v471
  %v487 = vshrl.u32 1326507024, %v472
  %v488 = vor.u32 %v486, %v487
  %vm489 = vcmp.lt.s32.totalorder %v470, 1
  %vm490 = vcmp.lt.s32.totalorder %v470, 2
  %vm491 = vcmp.lt.s32.totalorder %v470, 3
  %vm492 = vcmp.lt.s32.totalorder %v470, 4
  %v493 = vsel %vm489, %v473, %v476
  %v494 = vsel %vm492, %v482, 2102212464
  %v495 = vsel %vm491, %v479, %v494
  %v496 = vsel %vm490, %v493, %v495
  %v497 = vsel %vm489, %v476, %v479
  %v498 = vsel %vm492, %v485, 920167782
  %v499 = vsel %vm491, %v482, %v498
  %v500 = vsel %vm490, %v497, %v499
  %v501 = vsel %vm489, %v479, %v482
  %v502 = vsel %vm492, %v488, 1326507024
  %v503 = vsel %vm491, %v485, %v502
  %v504 = vsel %vm490, %v501, %v503
  %v505 = vshll.u32 %v465, 8
  %v506 = vmul.u32.u64.compose %v505, %v504
  %v507 = vextract.low.u32 %v506
  %v508 = vextract.high.u32 %v506
  %v509 = vmul.u32.u64.compose %v505, %v500
  %v510 = vextract.low.u32 %v509
  %v511 = vextract.high.u32 %v509
  %v512 = vmul.u32 %v505, %v496
  %v513 = vadd.s32 %v508, %v510
  %vm514 = vc.u32 %v508, %v510
  %v515 = vadd.s32 %v511, 1
  %v516 = vsel %vm514, %v515, %v511
  %v517 = vadd.s32 %v512, %v516
  %v518 = vadd.s32 %v517, 536870912
  %v519 = vshrl.u32 %v518, 30
  %v520 = vshll.u32 %v519, 30
  %v521 = vsub.s32 %v517, %v520
  %vm522 = vcmp.lt.s32.totalorder %v521, 0
  %v523 = vsub.s32 0, %v521
  %v524 = vsel %vm522, %v523, %v521
  %v525 = vclz %v524
  %v526 = vsub.s32 %v525, 2
  %vm527 = vcmp.gt.s32.totalorder 0, %v526
  %v528 = vsel %vm527, 0, %v526
  %v529 = vsub.s32 32, %v528
  %v530 = vshll.u32 %v521, %v528
  %v531 = vshrl.u32 %v513, %v529
  %v532 = vor.u32 %v530, %v531
  %v533 = vsub.s32 4294967266, %v528
  %v534 = vadd.s32 %v533, 127
  %v535 = vshll.u32 %v534, 23
  %v536 = vor.u32 4788187, %v535
  %v537 = vand.u32 2147483647, %v536
  %v539 = vcvt.s32.f32 %v532
  %v540 = vmul.f32 %v539, %v537
  %v541 = vxor.u32 %v540, 2147483648
  %v542 = vsel %vm459, %v541, %v540
  %v543 = vsub.s32 4, %v519
  %v544 = vsel %vm459, %v543, %v519
  %v545 = vsel %vm458, %v147, %v542
  %v546 = vsel %vm458, 0, %v544
  %v547 = vcosq.f32.pop %v545
  %v548 = vsinq.f32.pop %v545
  %vm549 = vweird.f32 %v147
  %v550 = vand.u32 %v546, 3
  %vm551 = vcmp.lt.s32.totalorder %v550, 2
  %vm552 = vcmp.eq.s32.totalorder %v550, 0
  %v553 = vxor.u32 %v548, 2147483648
  %v554 = vsel %vm552, %v547, %v553
  %vm555 = vcmp.eq.s32.totalorder %v550, 2
  %v556 = vxor.u32 %v547, 2147483648
  %v557 = vsel %vm555, %v556, %v548
  %v558 = vsel %vm551, %v554, %v557
  %v559 = vsel %vm549, nan, %v558
  %v560 = vmul.f32 %v122, %v250
  %v561 = vmul.f32 %v129, %v353
  %v562 = vmul.f32 %v136, %v456
  %v563 = vmul.f32 %v143, %v559
  %v564 = vand.u32 2147483647, %v144
  %vm565 = vcmp.le.f32.partialorder %v564, 0.7853982
  %vm566 = vcmp.lt.s32.totalorder %v144, 0
  %v567 = vand.u32 %v144, 2139095040
  %v568 = vshrl.u32 %v567, 23
  %v569 = vsub.s32 %v568, 127
  %v570 = vand.u32 2147483647, %v144
  %v571 = vand.u32 %v570, 8388607
  %v572 = vor.u32 %v571, 8388608
  %v573 = vsub.s32 0, %v572
  %v574 = vadd.s32 %v569, 1
  %vm575 = vcmp.gt.s32.totalorder %v574, 0
  %v576 = vsel %vm575, %v574, 0
  %v577 = vshrl.u32 %v576, 5
  %v578 = vand.u32 %v576, 31
  %v579 = vsub.s32 32, %v578
  %v580 = vshrl.u32 683565275, %v579
  %v581 = vshll.u32 683565275, %v578
  %v582 = vshrl.u32 2475754826, %v579
  %v583 = vor.u32 %v581, %v582
  %v584 = vshll.u32 2475754826, %v578
  %v585 = vshrl.u32 2131351028, %v579
  %v586 = vor.u32 %v584, %v585
  %v587 = vshll.u32 2131351028, %v578
  %v588 = vshrl.u32 2102212464, %v579
  %v589 = vor.u32 %v587, %v588
  %v590 = vshll.u32 2102212464, %v578
  %v591 = vshrl.u32 920167782, %v579
  %v592 = vor.u32 %v590, %v591
  %v593 = vshll.u32 920167782, %v578
  %v594 = vshrl.u32 1326507024, %v579
  %v595 = vor.u32 %v593, %v594
  %vm596 = vcmp.lt.s32.totalorder %v577, 1
  %vm597 = vcmp.lt.s32.totalorder %v577, 2
  %vm598 = vcmp.lt.s32.totalorder %v577, 3
  %vm599 = vcmp.lt.s32.totalorder %v577, 4
  %v600 = vsel %vm596, %v580, %v583
  %v601 = vsel %vm599, %v589, 2102212464
  %v602 = vsel %vm598, %v586, %v601
  %v603 = vsel %vm597, %v600, %v602
  %v604 = vsel %vm596, %v583, %v586
  %v605 = vsel %vm599, %v592, 920167782
  %v606 = vsel %vm598, %v589, %v605
  %v607 = vsel %vm597, %v604, %v606
  %v608 = vsel %vm596, %v586, %v589
  %v609 = vsel %vm599, %v595, 1326507024
  %v610 = vsel %vm598, %v592, %v609
  %v611 = vsel %vm597, %v608, %v610
  %v612 = vshll.u32 %v572, 8
  %v613 = vmul.u32.u64.compose %v612, %v611
  %v614 = vextract.low.u32 %v613
  %v615 = vextract.high.u32 %v613
  %v616 = vmul.u32.u64.compose %v612, %v607
  %v617 = vextract.low.u32 %v616
  %v618 = vextract.high.u32 %v616
  %v619 = vmul.u32 %v612, %v603
  %v620 = vadd.s32 %v615, %v617
  %vm621 = vc.u32 %v615, %v617
  %v622 = vadd.s32 %v618, 1
  %v623 = vsel %vm621, %v622, %v618
  %v624 = vadd.s32 %v619, %v623
  %v625 = vadd.s32 %v624, 536870912
  %v626 = vshrl.u32 %v625, 30
  %v627 = vshll.u32 %v626, 30
  %v628 = vsub.s32 %v624, %v627
  %vm629 = vcmp.lt.s32.totalorder %v628, 0
  %v630 = vsub.s32 0, %v628
  %v631 = vsel %vm629, %v630, %v628
  %v632 = vclz %v631
  %v633 = vsub.s32 %v632, 2
  %vm634 = vcmp.gt.s32.totalorder 0, %v633
  %v635 = vsel %vm634, 0, %v633
  %v636 = vsub.s32 32, %v635
  %v637 = vshll.u32 %v628, %v635
  %v638 = vshrl.u32 %v620, %v636
  %v639 = vor.u32 %v637, %v638
  %v640 = vsub.s32 4294967266, %v635
  %v641 = vadd.s32 %v640, 127
  %v642 = vshll.u32 %v641, 23
  %v643 = vor.u32 4788187, %v642
  %v644 = vand.u32 2147483647, %v643
  %v646 = vcvt.s32.f32 %v639
  %v647 = vmul.f32 %v646, %v644
  %v648 = vxor.u32 %v647, 2147483648
  %v649 = vsel %vm566, %v648, %v647
  %v650 = vsub.s32 4, %v626
  %v651 = vsel %vm566, %v650, %v626
  %v652 = vsel %vm565, %v144, %v649
  %v653 = vsel %vm565, 0, %v651
  %v654 = vcosq.f32.pop %v652
  %v655 = vsinq.f32.pop %v652
  %vm656 = vweird.f32 %v144
  %v657 = vadd.s32 %v653, 3
  %v658 = vand.u32 %v657, 3
  %vm659 = vcmp.lt.s32.totalorder %v658, 2
  %vm660 = vcmp.eq.s32.totalorder %v658, 0
  %v661 = vxor.u32 %v655, 2147483648
  %v662 = vsel %vm660, %v654, %v661
  %vm663 = vcmp.eq.s32.totalorder %v658, 2
  %v664 = vxor.u32 %v654, 2147483648
  %v665 = vsel %vm663, %v664, %v655
  %v666 = vsel %vm659, %v662, %v665
  %v667 = vsel %vm656, nan, %v666
  %v668 = vand.u32 2147483647, %v145
  %vm669 = vcmp.le.f32.partialorder %v668, 0.7853982
  %vm670 = vcmp.lt.s32.totalorder %v145, 0
  %v671 = vand.u32 %v145, 2139095040
  %v672 = vshrl.u32 %v671, 23
  %v673 = vsub.s32 %v672, 127
  %v674 = vand.u32 2147483647, %v145
  %v675 = vand.u32 %v674, 8388607
  %v676 = vor.u32 %v675, 8388608
  %v677 = vsub.s32 0, %v676
  %v678 = vadd.s32 %v673, 1
  %vm679 = vcmp.gt.s32.totalorder %v678, 0
  %v680 = vsel %vm679, %v678, 0
  %v681 = vshrl.u32 %v680, 5
  %v682 = vand.u32 %v680, 31
  %v683 = vsub.s32 32, %v682
  %v684 = vshrl.u32 683565275, %v683
  %v685 = vshll.u32 683565275, %v682
  %v686 = vshrl.u32 2475754826, %v683
  %v687 = vor.u32 %v685, %v686
  %v688 = vshll.u32 2475754826, %v682
  %v689 = vshrl.u32 2131351028, %v683
  %v690 = vor.u32 %v688, %v689
  %v691 = vshll.u32 2131351028, %v682
  %v692 = vshrl.u32 2102212464, %v683
  %v693 = vor.u32 %v691, %v692
  %v694 = vshll.u32 2102212464, %v682
  %v695 = vshrl.u32 920167782, %v683
  %v696 = vor.u32 %v694, %v695
  %v697 = vshll.u32 920167782, %v682
  %v698 = vshrl.u32 1326507024, %v683
  %v699 = vor.u32 %v697, %v698
  %vm700 = vcmp.lt.s32.totalorder %v681, 1
  %vm701 = vcmp.lt.s32.totalorder %v681, 2
  %vm702 = vcmp.lt.s32.totalorder %v681, 3
  %vm703 = vcmp.lt.s32.totalorder %v681, 4
  %v704 = vsel %vm700, %v684, %v687
  %v705 = vsel %vm703, %v693, 2102212464
  %v706 = vsel %vm702, %v690, %v705
  %v707 = vsel %vm701, %v704, %v706
  %v708 = vsel %vm700, %v687, %v690
  %v709 = vsel %vm703, %v696, 920167782
  %v710 = vsel %vm702, %v693, %v709
  %v711 = vsel %vm701, %v708, %v710
  %v712 = vsel %vm700, %v690, %v693
  %v713 = vsel %vm703, %v699, 1326507024
  %v714 = vsel %vm702, %v696, %v713
  %v715 = vsel %vm701, %v712, %v714
  %v716 = vshll.u32 %v676, 8
  %v717 = vmul.u32.u64.compose %v716, %v715
  %v718 = vextract.low.u32 %v717
  %v719 = vextract.high.u32 %v717
  %v720 = vmul.u32.u64.compose %v716, %v711
  %v721 = vextract.low.u32 %v720
  %v722 = vextract.high.u32 %v720
  %v723 = vmul.u32 %v716, %v707
  %v724 = vadd.s32 %v719, %v721
  %vm725 = vc.u32 %v719, %v721
  %v726 = vadd.s32 %v722, 1
  %v727 = vsel %vm725, %v726, %v722
  %v728 = vadd.s32 %v723, %v727
  %v729 = vadd.s32 %v728, 536870912
  %v730 = vshrl.u32 %v729, 30
  %v731 = vshll.u32 %v730, 30
  %v732 = vsub.s32 %v728, %v731
  %vm733 = vcmp.lt.s32.totalorder %v732, 0
  %v734 = vsub.s32 0, %v732
  %v735 = vsel %vm733, %v734, %v732
  %v736 = vclz %v735
  %v737 = vsub.s32 %v736, 2
  %vm738 = vcmp.gt.s32.totalorder 0, %v737
  %v739 = vsel %vm738, 0, %v737
  %v740 = vsub.s32 32, %v739
  %v741 = vshll.u32 %v732, %v739
  %v742 = vshrl.u32 %v724, %v740
  %v743 = vor.u32 %v741, %v742
  %v744 = vsub.s32 4294967266, %v739
  %v745 = vadd.s32 %v744, 127
  %v746 = vshll.u32 %v745, 23
  %v747 = vor.u32 4788187, %v746
  %v748 = vand.u32 2147483647, %v747
  %v750 = vcvt.s32.f32 %v743
  %v751 = vmul.f32 %v750, %v748
  %v752 = vxor.u32 %v751, 2147483648
  %v753 = vsel %vm670, %v752, %v751
  %v754 = vsub.s32 4, %v730
  %v755 = vsel %vm670, %v754, %v730
  %v756 = vsel %vm669, %v145, %v753
  %v757 = vsel %vm669, 0, %v755
  %v758 = vcosq.f32.pop %v756
  %v759 = vsinq.f32.pop %v756
  %vm760 = vweird.f32 %v145
  %v761 = vadd.s32 %v757, 3
  %v762 = vand.u32 %v761, 3
  %vm763 = vcmp.lt.s32.totalorder %v762, 2
  %vm764 = vcmp.eq.s32.totalorder %v762, 0
  %v765 = vxor.u32 %v759, 2147483648
  %v766 = vsel %vm764, %v758, %v765
  %vm767 = vcmp.eq.s32.totalorder %v762, 2
  %v768 = vxor.u32 %v758, 2147483648
  %v769 = vsel %vm767, %v768, %v759
  %v770 = vsel %vm763, %v766, %v769
  %v771 = vsel %vm760, nan, %v770
  %v772 = vand.u32 2147483647, %v146
  %vm773 = vcmp.le.f32.partialorder %v772, 0.7853982
  %vm774 = vcmp.lt.s32.totalorder %v146, 0
  %v775 = vand.u32 %v146, 2139095040
  %v776 = vshrl.u32 %v775, 23
  %v777 = vsub.s32 %v776, 127
  %v778 = vand.u32 2147483647, %v146
  %v779 = vand.u32 %v778, 8388607
  %v780 = vor.u32 %v779, 8388608
  %v781 = vsub.s32 0, %v780
  %v782 = vadd.s32 %v777, 1
  %vm783 = vcmp.gt.s32.totalorder %v782, 0
  %v784 = vsel %vm783, %v782, 0
  %v785 = vshrl.u32 %v784, 5
  %v786 = vand.u32 %v784, 31
  %v787 = vsub.s32 32, %v786
  %v788 = vshrl.u32 683565275, %v787
  %v789 = vshll.u32 683565275, %v786
  %v790 = vshrl.u32 2475754826, %v787
  %v791 = vor.u32 %v789, %v790
  %v792 = vshll.u32 2475754826, %v786
  %v793 = vshrl.u32 2131351028, %v787
  %v794 = vor.u32 %v792, %v793
  %v795 = vshll.u32 2131351028, %v786
  %v796 = vshrl.u32 2102212464, %v787
  %v797 = vor.u32 %v795, %v796
  %v798 = vshll.u32 2102212464, %v786
  %v799 = vshrl.u32 920167782, %v787
  %v800 = vor.u32 %v798, %v799
  %v801 = vshll.u32 920167782, %v786
  %v802 = vshrl.u32 1326507024, %v787
  %v803 = vor.u32 %v801, %v802
  %vm804 = vcmp.lt.s32.totalorder %v785, 1
  %vm805 = vcmp.lt.s32.totalorder %v785, 2
  %vm806 = vcmp.lt.s32.totalorder %v785, 3
  %vm807 = vcmp.lt.s32.totalorder %v785, 4
  %v808 = vsel %vm804, %v788, %v791
  %v809 = vsel %vm807, %v797, 2102212464
  %v810 = vsel %vm806, %v794, %v809
  %v811 = vsel %vm805, %v808, %v810
  %v812 = vsel %vm804, %v791, %v794
  %v813 = vsel %vm807, %v800, 920167782
  %v814 = vsel %vm806, %v797, %v813
  %v815 = vsel %vm805, %v812, %v814
  %v816 = vsel %vm804, %v794, %v797
  %v817 = vsel %vm807, %v803, 1326507024
  %v818 = vsel %vm806, %v800, %v817
  %v819 = vsel %vm805, %v816, %v818
  %v820 = vshll.u32 %v780, 8
  %v821 = vmul.u32.u64.compose %v820, %v819
  %v822 = vextract.low.u32 %v821
  %v823 = vextract.high.u32 %v821
  %v824 = vmul.u32.u64.compose %v820, %v815
  %v825 = vextract.low.u32 %v824
  %v826 = vextract.high.u32 %v824
  %v827 = vmul.u32 %v820, %v811
  %v828 = vadd.s32 %v823, %v825
  %vm829 = vc.u32 %v823, %v825
  %v830 = vadd.s32 %v826, 1
  %v831 = vsel %vm829, %v830, %v826
  %v832 = vadd.s32 %v827, %v831
  %v833 = vadd.s32 %v832, 536870912
  %v834 = vshrl.u32 %v833, 30
  %v835 = vshll.u32 %v834, 30
  %v836 = vsub.s32 %v832, %v835
  %vm837 = vcmp.lt.s32.totalorder %v836, 0
  %v838 = vsub.s32 0, %v836
  %v839 = vsel %vm837, %v838, %v836
  %v840 = vclz %v839
  %v841 = vsub.s32 %v840, 2
  %vm842 = vcmp.gt.s32.totalorder 0, %v841
  %v843 = vsel %vm842, 0, %v841
  %v844 = vsub.s32 32, %v843
  %v845 = vshll.u32 %v836, %v843
  %v846 = vshrl.u32 %v828, %v844
  %v847 = vor.u32 %v845, %v846
  %v848 = vsub.s32 4294967266, %v843
  %v849 = vadd.s32 %v848, 127
  %v850 = vshll.u32 %v849, 23
  %v851 = vor.u32 4788187, %v850
  %v852 = vand.u32 2147483647, %v851
  %v854 = vcvt.s32.f32 %v847
  %v855 = vmul.f32 %v854, %v852
  %v856 = vxor.u32 %v855, 2147483648
  %v857 = vsel %vm774, %v856, %v855
  %v858 = vsub.s32 4, %v834
  %v859 = vsel %vm774, %v858, %v834
  %v860 = vsel %vm773, %v146, %v857
  %v861 = vsel %vm773, 0, %v859
  %v862 = vcosq.f32.pop %v860
  %v863 = vsinq.f32.pop %v860
  %vm864 = vweird.f32 %v146
  %v865 = vadd.s32 %v861, 3
  %v866 = vand.u32 %v865, 3
  %vm867 = vcmp.lt.s32.totalorder %v866, 2
  %vm868 = vcmp.eq.s32.totalorder %v866, 0
  %v869 = vxor.u32 %v863, 2147483648
  %v870 = vsel %vm868, %v862, %v869
  %vm871 = vcmp.eq.s32.totalorder %v866, 2
  %v872 = vxor.u32 %v862, 2147483648
  %v873 = vsel %vm871, %v872, %v863
  %v874 = vsel %vm867, %v870, %v873
  %v875 = vsel %vm864, nan, %v874
  %v876 = vand.u32 2147483647, %v147
  %vm877 = vcmp.le.f32.partialorder %v876, 0.7853982
  %vm878 = vcmp.lt.s32.totalorder %v147, 0
  %v879 = vand.u32 %v147, 2139095040
  %v880 = vshrl.u32 %v879, 23
  %v881 = vsub.s32 %v880, 127
  %v882 = vand.u32 2147483647, %v147
  %v883 = vand.u32 %v882, 8388607
  %v884 = vor.u32 %v883, 8388608
  %v885 = vsub.s32 0, %v884
  %v886 = vadd.s32 %v881, 1
  %vm887 = vcmp.gt.s32.totalorder %v886, 0
  %v888 = vsel %vm887, %v886, 0
  %v889 = vshrl.u32 %v888, 5
  %v890 = vand.u32 %v888, 31
  %v891 = vsub.s32 32, %v890
  %v892 = vshrl.u32 683565275, %v891
  %v893 = vshll.u32 683565275, %v890
  %v894 = vshrl.u32 2475754826, %v891
  %v895 = vor.u32 %v893, %v894
  %v896 = vshll.u32 2475754826, %v890
  %v897 = vshrl.u32 2131351028, %v891
  %v898 = vor.u32 %v896, %v897
  %v899 = vshll.u32 2131351028, %v890
  %v900 = vshrl.u32 2102212464, %v891
  %v901 = vor.u32 %v899, %v900
  %v902 = vshll.u32 2102212464, %v890
  %v903 = vshrl.u32 920167782, %v891
  %v904 = vor.u32 %v902, %v903
  %v905 = vshll.u32 920167782, %v890
  %v906 = vshrl.u32 1326507024, %v891
  %v907 = vor.u32 %v905, %v906
  %vm908 = vcmp.lt.s32.totalorder %v889, 1
  %vm909 = vcmp.lt.s32.totalorder %v889, 2
  %vm910 = vcmp.lt.s32.totalorder %v889, 3
  %vm911 = vcmp.lt.s32.totalorder %v889, 4
  %v912 = vsel %vm908, %v892, %v895
  %v913 = vsel %vm911, %v901, 2102212464
  %v914 = vsel %vm910, %v898, %v913
  %v915 = vsel %vm909, %v912, %v914
  %v916 = vsel %vm908, %v895, %v898
  %v917 = vsel %vm911, %v904, 920167782
  %v918 = vsel %vm910, %v901, %v917
  %v919 = vsel %vm909, %v916, %v918
  %v920 = vsel %vm908, %v898, %v901
  %v921 = vsel %vm911, %v907, 1326507024
  %v922 = vsel %vm910, %v904, %v921
  %v923 = vsel %vm909, %v920, %v922
  %v924 = vshll.u32 %v884, 8
  %v925 = vmul.u32.u64.compose %v924, %v923
  %v926 = vextract.low.u32 %v925
  %v927 = vextract.high.u32 %v925
  %v928 = vmul.u32.u64.compose %v924, %v919
  %v929 = vextract.low.u32 %v928
  %v930 = vextract.high.u32 %v928
  %v931 = vmul.u32 %v924, %v915
  %v932 = vadd.s32 %v927, %v929
  %vm933 = vc.u32 %v927, %v929
  %v934 = vadd.s32 %v930, 1
  %v935 = vsel %vm933, %v934, %v930
  %v936 = vadd.s32 %v931, %v935
  %v937 = vadd.s32 %v936, 536870912
  %v938 = vshrl.u32 %v937, 30
  %v939 = vshll.u32 %v938, 30
  %v940 = vsub.s32 %v936, %v939
  %vm941 = vcmp.lt.s32.totalorder %v940, 0
  %v942 = vsub.s32 0, %v940
  %v943 = vsel %vm941, %v942, %v940
  %v944 = vclz %v943
  %v945 = vsub.s32 %v944, 2
  %vm946 = vcmp.gt.s32.totalorder 0, %v945
  %v947 = vsel %vm946, 0, %v945
  %v948 = vsub.s32 32, %v947
  %v949 = vshll.u32 %v940, %v947
  %v950 = vshrl.u32 %v932, %v948
  %v951 = vor.u32 %v949, %v950
  %v952 = vsub.s32 4294967266, %v947
  %v953 = vadd.s32 %v952, 127
  %v954 = vshll.u32 %v953, 23
  %v955 = vor.u32 4788187, %v954
  %v956 = vand.u32 2147483647, %v955
  %v958 = vcvt.s32.f32 %v951
  %v959 = vmul.f32 %v958, %v956
  %v960 = vxor.u32 %v959, 2147483648
  %v961 = vsel %vm878, %v960, %v959
  %v962 = vsub.s32 4, %v938
  %v963 = vsel %vm878, %v962, %v938
  %v964 = vsel %vm877, %v147, %v961
  %v965 = vsel %vm877, 0, %v963
  %v966 = vcosq.f32.pop %v964
  %v967 = vsinq.f32.pop %v964
  %vm968 = vweird.f32 %v147
  %v969 = vadd.s32 %v965, 3
  %v970 = vand.u32 %v969, 3
  %vm971 = vcmp.lt.s32.totalorder %v970, 2
  %vm972 = vcmp.eq.s32.totalorder %v970, 0
  %v973 = vxor.u32 %v967, 2147483648
  %v974 = vsel %vm972, %v966, %v973
  %vm975 = vcmp.eq.s32.totalorder %v970, 2
  %v976 = vxor.u32 %v966, 2147483648
  %v977 = vsel %vm975, %v976, %v967
  %v978 = vsel %vm971, %v974, %v977
  %v979 = vsel %vm968, nan, %v978
  %v980 = vmul.f32 %v122, %v667
  %v981 = vmul.f32 %v129, %v771
  %v982 = vmul.f32 %v136, %v875
  %v983 = vmul.f32 %v143, %v979
  %v984 = vld [vmem:[%s1] sm:$0xff]
  %v989 = vcombine.low %v560, %v561
  %v990 = vcombine.low %v562, %v563
  %v992 = vunpack.c.l.s4 1983009808
  %v993 = vunpack.c.0.s8 %v992
  %v994 = vlaneseq
  %v995 = vshrl.u32 %v994, 7
  %v996 = vsub.s32 %v993, %v995
  %v997 = vrot.slane %v989, %v996
  %v999 = vunpack.c.l.s4 1983009808
  %v1000 = vunpack.c.0.s8 %v999
  %v1001 = vlaneseq
  %v1002 = vshrl.u32 %v1001, 7
  %v1003 = vsub.s32 %v1000, %v1002
  %v1004 = vrot.slane %v990, %v1003
  %v1005 = vcombine.low %v997, %v1004
  %v1007 = vadd.f32 %v984, %v1005
  %1008 = vst [vmem:[%s2] sm:$0xff] %v1007
  %v1009 = vld [vmem:[%s1 + $0x8] sm:$0xff]
  %v1014 = vcombine.low %v980, %v981
  %v1015 = vcombine.low %v982, %v983
  %v1017 = vunpack.c.l.s4 1983009808
  %v1018 = vunpack.c.0.s8 %v1017
  %v1019 = vlaneseq
  %v1020 = vshrl.u32 %v1019, 7
  %v1021 = vsub.s32 %v1018, %v1020
  %v1022 = vrot.slane %v1014, %v1021
  %v1024 = vunpack.c.l.s4 1983009808
  %v1025 = vunpack.c.0.s8 %v1024
  %v1026 = vlaneseq
  %v1027 = vshrl.u32 %v1026, 7
  %v1028 = vsub.s32 %v1025, %v1027
  %v1029 = vrot.slane %v1015, %v1028
  %v1030 = vcombine.low %v1022, %v1029
  %v1032 = vadd.f32 %v1009, %v1030
  %1033 = vst [vmem:[%s2 + $0x8] sm:$0xff] %v1032
  // Predicated region
  $region6: #{gaussian_noise.1} parent=0 // pred_check
    _
  $region7: #{gaussian_noise.1} parent=0 // pred_check_branch
    %1035 = sbr.rel (0) target = $region9
  $region8: #{gaussian_noise.1} parent=0 // pred_region
    _
  $region9: #{gaussian_noise.1} parent=0 // pred_fallthru
    _
  // Predicated region
  $region10: #{gaussian_noise.1} parent=0 // pred_check
    _
  $region11: #{gaussian_noise.1} parent=0 // pred_check_branch
    %1037 = sbr.rel (0) target = $region13
  $region12: #{gaussian_noise.1} parent=0 // pred_region
    _
  $region13: #{gaussian_noise.1} parent=0 // pred_fallthru
    _

</llo_original>
